<compile_context>
chip_gen: v5e
topology: v5e:2x2
jax: 0.10.0
libtpu: 0.0.40
codegen_flags: <defaults>
</compile_context>

<pallas_src>
import functools
import math

import jax
import jax.numpy as jnp
import numpy as np
from jax.experimental import pallas as pl
from jax.experimental.pallas import tpu as pltpu


def mha_kernel(x_ref, wqkv_ref, bqkv_ref, wo_ref, bo_ref, out_ref, *,
               num_heads, approx_recip):
    bt, S, H = x_ref.shape
    dh = H // num_heads

    # ---- fused QKV projection: one MXU matmul, M = bt*S, K = H, N = 3H ----
    x2 = x_ref[...].reshape(bt * S, H)                  # bf16 (cast at call boundary)
    qkv = jnp.dot(x2, wqkv_ref[...],
                  preferred_element_type=jnp.float32) + bqkv_ref[...]

    # ---- heads -> batch dim via a leading-axis stack (no sublane<->major
    # transpose needed; stack along a new leading dim is pure tile placement).
    # The per-head lane slices start at dh-lane offsets; at real ViT sizes
    # (dh=64) each costs a lane rotate.
    # TODO(synk): repack wqkv with 128-lane-aligned per-head blocks so the
    # slices below are free at dh=64.
    def heads(base):
        parts = [qkv[:, base + h * dh: base + (h + 1) * dh].reshape(bt, S, dh)
                 for h in range(num_heads)]
        return (jnp.stack(parts, axis=0)
                .reshape(num_heads * bt, S, dh).astype(jnp.bfloat16))

    q = heads(0)          # 1/sqrt(dh) already folded into Wq / bq on the host
    k = heads(H)
    v = heads(2 * H)

    # ---- ONE batched scores / softmax / PV over all heads (batch = nh*bt) ----
    s = jnp.einsum('bqd,bkd->bqk', q, k, preferred_element_type=jnp.float32)
    m = jnp.max(s, axis=-1, keepdims=True)
    e = jnp.exp(s - m)
    denom = jnp.sum(e, axis=-1, keepdims=True)
    if approx_recip:
        p = e * pl.reciprocal(denom, approx=True)       # EUP slot, ~free
    else:
        p = e / denom                                   # exact path for validation
    ctx = jnp.einsum('bqk,bkd->bqd', p.astype(jnp.bfloat16), v,
                     preferred_element_type=jnp.float32)  # (nh*bt, S, dh) f32

    # ---- re-concatenate heads on the lane dim (torch.cat order) and do ONE
    # output projection with full contraction K = H (no per-head K=dh matmuls,
    # no f32 RMW accumulator). ----
    ctx = ctx.astype(jnp.bfloat16)
    ctx_cat = jnp.concatenate(
        [ctx[h * bt:(h + 1) * bt] for h in range(num_heads)], axis=-1)  # (bt, S, H)
    out = jnp.dot(ctx_cat.reshape(bt * S, H), wo_ref[...],
                  preferred_element_type=jnp.float32) + bo_ref[...]
    out_ref[...] = out.reshape(bt, S, H).astype(out_ref.dtype)


def _vmem_capacity_bytes():
    try:
        return int(pltpu.get_tpu_info().vmem_capacity_bytes)
    except Exception:
        return 64 * 1024 * 1024      # conservative fallback: v7x per-TC VMEM


def _per_step_vmem_bytes(bt, seq, hidden, num_heads, out_itemsize):
    """Per-grid-step VMEM footprint including intermediates (not just I/O tiles)."""
    rows = bt * seq
    f32, bf16 = 4, 2
    x_tiles = 2 * rows * hidden * bf16                 # double-buffered bf16 x tile
    out_tiles = 2 * rows * hidden * out_itemsize       # double-buffered output tile
    qkv = rows * 3 * hidden * f32                      # fused projection (f32)
    qkv_bf16 = 3 * rows * hidden * bf16                # stacked per-head q/k/v
    scores = 3 * num_heads * bt * seq * seq * f32      # s, e, p
    ctx = rows * hidden * f32                          # batched PV output
    ctx_cat = rows * hidden * bf16                     # concatenated heads
    out_f32 = rows * hidden * f32                      # pre-cast output
    return x_tiles + out_tiles + qkv + qkv_bf16 + scores + ctx + ctx_cat + out_f32


def _choose_batch_tile(batch, seq, hidden, num_heads, out_itemsize,
                       tile_budget, prefer_even_grid):
    """Largest divisor of `batch` whose per-step footprint fits the budget.
    On v7x-class chips prefer an even grid so both TensorCores stay busy."""
    divisors = [d for d in range(1, batch + 1) if batch % d == 0]
    fitting = [d for d in divisors
               if _per_step_vmem_bytes(d, seq, hidden, num_heads, out_itemsize)
               <= tile_budget]
    if not fitting:
        fitting = [1]
    if prefer_even_grid:
        even = [d for d in fitting if (batch // d) % 2 == 0]
        if even:
            return max(even)
    return max(fitting)


def pack_params(params, num_heads, *, weight_dtype=jnp.bfloat16):
    """One-time host-side packing: fold 1/sqrt(dh) into the query columns/bias
    and cast matmul weights to bf16 (MXU-native).  Biases stay f32."""
    H = params["wo"].shape[0]
    dh = H // num_heads
    scale = 1.0 / math.sqrt(dh)
    wqkv = jnp.concatenate([params["wqkv"][:, :H] * scale, params["wqkv"][:, H:]], axis=1)
    bqkv = jnp.concatenate([params["bqkv"][:, :H] * scale, params["bqkv"][:, H:]], axis=1)
    return {
        "wqkv": wqkv.astype(weight_dtype),
        "bqkv": bqkv.astype(jnp.float32),
        "wo": params["wo"].astype(weight_dtype),
        "bo": params["bo"].astype(jnp.float32),
    }


def multi_head_attention(x, packed, num_heads, *, batch_tile=None, approx_recip=True):
    B, S, H = x.shape
    assert H % num_heads == 0
    dh = H // num_heads
    wqkv, bqkv, wo, bo = packed["wqkv"], packed["bqkv"], packed["wo"], packed["bo"]

    out_dtype = x.dtype
    out_itemsize = jnp.dtype(out_dtype).itemsize
    x_bf = x.astype(jnp.bfloat16)        # halves x-tile DMA traffic + VMEM footprint

    weight_bytes = int(wqkv.size * wqkv.dtype.itemsize + wo.size * wo.dtype.itemsize +
                       bqkv.size * bqkv.dtype.itemsize + bo.size * bo.dtype.itemsize)

    # Generation-aware VMEM budget: v7x TCs have 64 MiB physical (keep <=48 MiB
    # scoped, prefer even grid for its 2 TCs); v5e/v6e have 128 MiB and a single
    # TC, so bigger tiles are strictly better (grid is a sequential loop there).
    vmem_physical = _vmem_capacity_bytes()
    small_vmem = vmem_physical <= 64 * 1024 * 1024
    vmem_budget = min((48 << 20) if small_vmem else (96 << 20),
                      int(0.75 * vmem_physical))

    if batch_tile is None:
        batch_tile = _choose_batch_tile(
            B, S, H, num_heads, out_itemsize,
            tile_budget=max(1, int(0.8 * (vmem_budget - weight_bytes))),
            prefer_even_grid=small_vmem)
    assert B % batch_tile == 0
    grid = (B // batch_tile,)

    # Resident (single-copy, non-pipelined) weights: whole array mapped to VMEM,
    # so they are not double-buffered by the grid pipeline.
    def resident():
        return pl.BlockSpec(memory_space=pltpu.MemorySpace.VMEM)

    in_specs = [
        pl.BlockSpec((batch_tile, S, H), lambda b: (b, 0, 0)),   # x tile (pipelined)
        resident(), resident(), resident(), resident(),          # wqkv, bqkv, wo, bo
    ]
    out_specs = pl.BlockSpec((batch_tile, S, H), lambda b: (b, 0, 0))

    flops = (2 * B * S * H * 3 * H                    # fused QKV projection
             + 2 * B * num_heads * S * S * dh * 2     # QK^T + PV
             + 2 * B * S * H * H)                     # output projection
    bytes_accessed = (x_bf.size * 2 + B * S * H * out_itemsize + weight_bytes)
    cost = pl.CostEstimate(flops=int(flops),
                           transcendentals=int(B * num_heads * S * S),
                           bytes_accessed=int(bytes_accessed))

    need = weight_bytes + _per_step_vmem_bytes(batch_tile, S, H, num_heads, out_itemsize)
    vmem_limit = int(min(vmem_budget, max(32 << 20, int(1.25 * need))))

    return pl.pallas_call(
        functools.partial(mha_kernel, num_heads=num_heads, approx_recip=approx_recip),
        out_shape=jax.ShapeDtypeStruct((B, S, H), out_dtype),
        grid=grid,
        in_specs=in_specs,
        out_specs=out_specs,
        compiler_params=pltpu.CompilerParams(
            dimension_semantics=("parallel",),
            vmem_limit_bytes=vmem_limit),
        cost_estimate=cost,
    )(x_bf, wqkv, bqkv, wo, bo)


# ---- pure-JAX (f32) reference mirroring the PyTorch module exactly ----
def mha_ref(x, params, num_heads):
    B, S, H = x.shape
    dh = H // num_heads
    qkv = x @ params["wqkv"] + params["bqkv"]             # (B, S, 3H)
    q, k, v = qkv[..., :H], qkv[..., H:2 * H], qkv[..., 2 * H:]
    heads = []
    for h in range(num_heads):
        qh = q[..., h * dh:(h + 1) * dh]
        kh = k[..., h * dh:(h + 1) * dh]
        vh = v[..., h * dh:(h + 1) * dh]
        scores = jnp.einsum('bqd,bkd->bqk', qh, kh) / math.sqrt(dh)
        probs = jax.nn.softmax(scores, axis=-1)
        heads.append(jnp.einsum('bqk,bkd->bqd', probs, vh))
    attn = jnp.concatenate(heads, axis=-1)                # torch.cat over heads
    return attn @ params["wo"] + params["bo"]             # output_projection (+ identity dropout)


if __name__ == "__main__":
    # Small ViT-like config (hidden=32, 4 heads => head size 8, seq=8, batch=2).
    # TODO(synk): demo H=32 < 128 lanes; tune/benchmark at real ViT shapes
    # (H=768, dh=64, S padded to a multiple of 8) where the output is lane-dense.
    B, S = 2, 8
    H = 32
    num_heads = 4

    key = jax.random.PRNGKey(0)
    ks = jax.random.split(key, 5)
    scale = 0.05
    params = {
        "wqkv": scale * jax.random.normal(ks[0], (H, 3 * H), jnp.float32),
        "bqkv": scale * jax.random.normal(ks[1], (1, 3 * H), jnp.float32),
        "wo": scale * jax.random.normal(ks[2], (H, H), jnp.float32),
        "bo": scale * jax.random.normal(ks[3], (1, H), jnp.float32),
    }
    x = jax.random.normal(ks[4], (B, S, H), jnp.float32)

    packed = pack_params(params, num_heads)               # one-time host transform
    out = jax.block_until_ready(multi_head_attention(x, packed, num_heads))
    ref = jax.block_until_ready(mha_ref(x, params, num_heads))
    # bf16 matmul inputs (f32 accumulation) + approx reciprocal => looser tolerance;
    # use approx_recip=False for a tighter validation path.
    np.testing.assert_allclose(np.asarray(out), np.asarray(ref), rtol=2e-2, atol=2e-2)

    print("KERNEL_OK")
</pallas_src>

<mosaic_0001>
module attributes {stable_mosaic.version = 11 : i64} {
  func.func @mha_kernel(%arg0: i32, %arg1: memref<1x8x32xbf16, #tpu.memory_space<vmem>>, %arg2: memref<32x96xbf16, #tpu.memory_space<vmem>>, %arg3: memref<1x96xf32, #tpu.memory_space<vmem>>, %arg4: memref<32x32xbf16, #tpu.memory_space<vmem>>, %arg5: memref<1x32xf32, #tpu.memory_space<vmem>>, %arg6: memref<1x8x32xf32, #tpu.memory_space<vmem>>) attributes {dimension_semantics = [#tpu.dimension_semantics<parallel>], iteration_bounds = array<i64: 2>, scalar_prefetch = 0 : i64, scratch_operands = 0 : i64, tpu.core_type = #tpu.core_type<tc>, window_params = [{transform_indices = @transform_0, window_bounds = array<i64: 1, 8, 32>}, {pipeline_mode = #tpu.pipeline_mode<synchronous>, transform_indices = @transform_1, window_bounds = array<i64: 32, 96>}, {pipeline_mode = #tpu.pipeline_mode<synchronous>, transform_indices = @transform_2, window_bounds = array<i64: 1, 96>}, {pipeline_mode = #tpu.pipeline_mode<synchronous>, transform_indices = @transform_3, window_bounds = array<i64: 32, 32>}, {pipeline_mode = #tpu.pipeline_mode<synchronous>, transform_indices = @transform_4, window_bounds = array<i64: 1, 32>}, {transform_indices = @transform_5, window_bounds = array<i64: 1, 8, 32>}]} {
    %c0 = arith.constant 0 : index
    %c0_0 = arith.constant 0 : index
    %c0_1 = arith.constant 0 : index
    %0 = vector.load %arg1[%c0, %c0_0, %c0_1] : memref<1x8x32xbf16, #tpu.memory_space<vmem>>, vector<1x8x32xbf16>
    %1 = vector.shape_cast %0 : vector<1x8x32xbf16> to vector<8x32xbf16>
    %c0_2 = arith.constant 0 : index
    %c0_3 = arith.constant 0 : index
    %2 = vector.load %arg2[%c0_2, %c0_3] : memref<32x96xbf16, #tpu.memory_space<vmem>>, vector<32x96xbf16>
    %cst = arith.constant dense<0.000000e+00> : vector<8x96xf32>
    %3 = tpu.matmul %1, %2, %cst {dimension_numbers = #tpu.dot_dimension_numbers<[1], [0], [0], [1], [0, 0, 1, 1], [], []>} : vector<8x32xbf16>, vector<32x96xbf16>, vector<8x96xf32> -> vector<8x96xf32>
    %c0_4 = arith.constant 0 : index
    %c0_5 = arith.constant 0 : index
    %4 = vector.load %arg3[%c0_4, %c0_5] : memref<1x96xf32, #tpu.memory_space<vmem>>, vector<1x96xf32>
    %5 = vector.broadcast %4 : vector<1x96xf32> to vector<8x96xf32>
    %6 = arith.addf %3, %5 : vector<8x96xf32>
    %7 = vector.extract_strided_slice %6 {offsets = [0, 0], sizes = [8, 8], strides = [1, 1]} : vector<8x96xf32> to vector<8x8xf32>
    %8 = vector.shape_cast %7 : vector<8x8xf32> to vector<1x8x8xf32>
    %9 = vector.extract_strided_slice %6 {offsets = [0, 8], sizes = [8, 8], strides = [1, 1]} : vector<8x96xf32> to vector<8x8xf32>
    %10 = vector.shape_cast %9 : vector<8x8xf32> to vector<1x8x8xf32>
    %11 = vector.extract_strided_slice %6 {offsets = [0, 16], sizes = [8, 8], strides = [1, 1]} : vector<8x96xf32> to vector<8x8xf32>
    %12 = vector.shape_cast %11 : vector<8x8xf32> to vector<1x8x8xf32>
    %13 = vector.extract_strided_slice %6 {offsets = [0, 24], sizes = [8, 8], strides = [1, 1]} : vector<8x96xf32> to vector<8x8xf32>
    %14 = vector.shape_cast %13 : vector<8x8xf32> to vector<1x8x8xf32>
    %15 = vector.shape_cast %8 : vector<1x8x8xf32> to vector<1x1x8x8xf32>
    %16 = vector.shape_cast %10 : vector<1x8x8xf32> to vector<1x1x8x8xf32>
    %17 = vector.shape_cast %12 : vector<1x8x8xf32> to vector<1x1x8x8xf32>
    %18 = vector.shape_cast %14 : vector<1x8x8xf32> to vector<1x1x8x8xf32>
    %19 = tpu.concatenate %15, %16, %17, %18 in 0 : vector<1x1x8x8xf32>, vector<1x1x8x8xf32>, vector<1x1x8x8xf32>, vector<1x1x8x8xf32> -> vector<4x1x8x8xf32>
    %20 = vector.shape_cast %19 : vector<4x1x8x8xf32> to vector<4x8x8xf32>
    %21 = arith.truncf %20 : vector<4x8x8xf32> to vector<4x8x8xbf16>
    %22 = vector.extract_strided_slice %6 {offsets = [0, 32], sizes = [8, 8], strides = [1, 1]} : vector<8x96xf32> to vector<8x8xf32>
    %23 = vector.shape_cast %22 : vector<8x8xf32> to vector<1x8x8xf32>
    %24 = vector.extract_strided_slice %6 {offsets = [0, 40], sizes = [8, 8], strides = [1, 1]} : vector<8x96xf32> to vector<8x8xf32>
    %25 = vector.shape_cast %24 : vector<8x8xf32> to vector<1x8x8xf32>
    %26 = vector.extract_strided_slice %6 {offsets = [0, 48], sizes = [8, 8], strides = [1, 1]} : vector<8x96xf32> to vector<8x8xf32>
    %27 = vector.shape_cast %26 : vector<8x8xf32> to vector<1x8x8xf32>
    %28 = vector.extract_strided_slice %6 {offsets = [0, 56], sizes = [8, 8], strides = [1, 1]} : vector<8x96xf32> to vector<8x8xf32>
    %29 = vector.shape_cast %28 : vector<8x8xf32> to vector<1x8x8xf32>
    %30 = vector.shape_cast %23 : vector<1x8x8xf32> to vector<1x1x8x8xf32>
    %31 = vector.shape_cast %25 : vector<1x8x8xf32> to vector<1x1x8x8xf32>
    %32 = vector.shape_cast %27 : vector<1x8x8xf32> to vector<1x1x8x8xf32>
    %33 = vector.shape_cast %29 : vector<1x8x8xf32> to vector<1x1x8x8xf32>
    %34 = tpu.concatenate %30, %31, %32, %33 in 0 : vector<1x1x8x8xf32>, vector<1x1x8x8xf32>, vector<1x1x8x8xf32>, vector<1x1x8x8xf32> -> vector<4x1x8x8xf32>
    %35 = vector.shape_cast %34 : vector<4x1x8x8xf32> to vector<4x8x8xf32>
    %36 = arith.truncf %35 : vector<4x8x8xf32> to vector<4x8x8xbf16>
    %37 = vector.extract_strided_slice %6 {offsets = [0, 64], sizes = [8, 8], strides = [1, 1]} : vector<8x96xf32> to vector<8x8xf32>
    %38 = vector.shape_cast %37 : vector<8x8xf32> to vector<1x8x8xf32>
    %39 = vector.extract_strided_slice %6 {offsets = [0, 72], sizes = [8, 8], strides = [1, 1]} : vector<8x96xf32> to vector<8x8xf32>
    %40 = vector.shape_cast %39 : vector<8x8xf32> to vector<1x8x8xf32>
    %41 = vector.extract_strided_slice %6 {offsets = [0, 80], sizes = [8, 8], strides = [1, 1]} : vector<8x96xf32> to vector<8x8xf32>
    %42 = vector.shape_cast %41 : vector<8x8xf32> to vector<1x8x8xf32>
    %43 = vector.extract_strided_slice %6 {offsets = [0, 88], sizes = [8, 8], strides = [1, 1]} : vector<8x96xf32> to vector<8x8xf32>
    %44 = vector.shape_cast %43 : vector<8x8xf32> to vector<1x8x8xf32>
    %45 = vector.shape_cast %38 : vector<1x8x8xf32> to vector<1x1x8x8xf32>
    %46 = vector.shape_cast %40 : vector<1x8x8xf32> to vector<1x1x8x8xf32>
    %47 = vector.shape_cast %42 : vector<1x8x8xf32> to vector<1x1x8x8xf32>
    %48 = vector.shape_cast %44 : vector<1x8x8xf32> to vector<1x1x8x8xf32>
    %49 = tpu.concatenate %45, %46, %47, %48 in 0 : vector<1x1x8x8xf32>, vector<1x1x8x8xf32>, vector<1x1x8x8xf32>, vector<1x1x8x8xf32> -> vector<4x1x8x8xf32>
    %50 = vector.shape_cast %49 : vector<4x1x8x8xf32> to vector<4x8x8xf32>
    %51 = arith.truncf %50 : vector<4x8x8xf32> to vector<4x8x8xbf16>
    "tpu.trace_start"() <{level = 10 : i32, message = "bqd,bkd->bqk"}> : () -> ()
    %cst_6 = arith.constant dense<0.000000e+00> : vector<4x8x8xf32>
    %52 = tpu.matmul %21, %36, %cst_6 {dimension_numbers = #tpu.dot_dimension_numbers<[2], [2], [1], [1], [0, 0, 0, 1, 1, 1], [0], [0]>} : vector<4x8x8xbf16>, vector<4x8x8xbf16>, vector<4x8x8xf32> -> vector<4x8x8xf32>
    "tpu.trace_stop"() : () -> ()
    %cst_7 = arith.constant dense<0xFF800000> : vector<4x8xf32>
    %53 = vector.multi_reduction <maximumf>, %52, %cst_7 [2] : vector<4x8x8xf32> to vector<4x8xf32>
    %54 = vector.shape_cast %53 : vector<4x8xf32> to vector<4x8x1xf32>
    %55 = vector.broadcast %54 : vector<4x8x1xf32> to vector<4x8x8xf32>
    %56 = arith.subf %52, %55 : vector<4x8x8xf32>
    %57 = math.exp %56 : vector<4x8x8xf32>
    %cst_8 = arith.constant dense<0.000000e+00> : vector<4x8xf32>
    %58 = vector.multi_reduction <add>, %57, %cst_8 [2] : vector<4x8x8xf32> to vector<4x8xf32>
    %59 = vector.shape_cast %58 : vector<4x8xf32> to vector<4x8x1xf32>
    %60 = tpu.reciprocal %59 {approx = true} : vector<4x8x1xf32> -> vector<4x8x1xf32>
    %61 = vector.broadcast %60 : vector<4x8x1xf32> to vector<4x8x8xf32>
    %62 = arith.mulf %57, %61 : vector<4x8x8xf32>
    %63 = arith.truncf %62 : vector<4x8x8xf32> to vector<4x8x8xbf16>
    "tpu.trace_start"() <{level = 10 : i32, message = "bqk,bkd->bqd"}> : () -> ()
    %cst_9 = arith.constant dense<0.000000e+00> : vector<4x8x8xf32>
    %64 = tpu.matmul %63, %51, %cst_9 {dimension_numbers = #tpu.dot_dimension_numbers<[2], [1], [1], [2], [0, 0, 0, 1, 1, 2], [0], [0]>} : vector<4x8x8xbf16>, vector<4x8x8xbf16>, vector<4x8x8xf32> -> vector<4x8x8xf32>
    "tpu.trace_stop"() : () -> ()
    %65 = arith.truncf %64 : vector<4x8x8xf32> to vector<4x8x8xbf16>
    %66 = vector.extract_strided_slice %65 {offsets = [0, 0, 0], sizes = [1, 8, 8], strides = [1, 1, 1]} : vector<4x8x8xbf16> to vector<1x8x8xbf16>
    %67 = vector.extract_strided_slice %65 {offsets = [1, 0, 0], sizes = [1, 8, 8], strides = [1, 1, 1]} : vector<4x8x8xbf16> to vector<1x8x8xbf16>
    %68 = vector.extract_strided_slice %65 {offsets = [2, 0, 0], sizes = [1, 8, 8], strides = [1, 1, 1]} : vector<4x8x8xbf16> to vector<1x8x8xbf16>
    %69 = vector.extract_strided_slice %65 {offsets = [3, 0, 0], sizes = [1, 8, 8], strides = [1, 1, 1]} : vector<4x8x8xbf16> to vector<1x8x8xbf16>
    %70 = tpu.concatenate %66, %67, %68, %69 in 2 : vector<1x8x8xbf16>, vector<1x8x8xbf16>, vector<1x8x8xbf16>, vector<1x8x8xbf16> -> vector<1x8x32xbf16>
    %71 = vector.shape_cast %70 : vector<1x8x32xbf16> to vector<8x32xbf16>
    %c0_10 = arith.constant 0 : index
    %c0_11 = arith.constant 0 : index
    %72 = vector.load %arg4[%c0_10, %c0_11] : memref<32x32xbf16, #tpu.memory_space<vmem>>, vector<32x32xbf16>
    %cst_12 = arith.constant dense<0.000000e+00> : vector<8x32xf32>
    %73 = tpu.matmul %71, %72, %cst_12 {dimension_numbers = #tpu.dot_dimension_numbers<[1], [0], [0], [1], [0, 0, 1, 1], [], []>} : vector<8x32xbf16>, vector<32x32xbf16>, vector<8x32xf32> -> vector<8x32xf32>
    %c0_13 = arith.constant 0 : index
    %c0_14 = arith.constant 0 : index
    %74 = vector.load %arg5[%c0_13, %c0_14] : memref<1x32xf32, #tpu.memory_space<vmem>>, vector<1x32xf32>
    %75 = vector.broadcast %74 : vector<1x32xf32> to vector<8x32xf32>
    %76 = arith.addf %73, %75 : vector<8x32xf32>
    %77 = vector.shape_cast %76 : vector<8x32xf32> to vector<1x8x32xf32>
    %c0_15 = arith.constant 0 : index
    %c0_16 = arith.constant 0 : index
    %c0_17 = arith.constant 0 : index
    %78 = vector.load %arg6[%c0_15, %c0_16, %c0_17] : memref<1x8x32xf32, #tpu.memory_space<vmem>>, vector<1x8x32xf32>
    tpu.vector_store %arg6[%c0_15, %c0_16, %c0_17], %77 {strides = array<i32>} : memref<1x8x32xf32, #tpu.memory_space<vmem>>, vector<1x8x32xf32>,
    return
  }
  func.func @transform_0(%arg0: i32) -> (i32, i32, i32) {
    %c0_i32 = arith.constant 0 : i32
    %c0_i32_0 = arith.constant 0 : i32
    %c0_i32_1 = arith.constant 0 : i32
    return %arg0, %c0_i32, %c0_i32_0 : i32, i32, i32
  }
  func.func @transform_1(%arg0: i32) -> (i32, i32) {
    %c0_i32 = arith.constant 0 : i32
    %c0_i32_0 = arith.constant 0 : i32
    %c0_i32_1 = arith.constant 0 : i32
    return %c0_i32, %c0_i32_0 : i32, i32
  }
  func.func @transform_2(%arg0: i32) -> (i32, i32) {
    %c0_i32 = arith.constant 0 : i32
    %c0_i32_0 = arith.constant 0 : i32
    %c0_i32_1 = arith.constant 0 : i32
    return %c0_i32, %c0_i32_0 : i32, i32
  }
  func.func @transform_3(%arg0: i32) -> (i32, i32) {
    %c0_i32 = arith.constant 0 : i32
    %c0_i32_0 = arith.constant 0 : i32
    %c0_i32_1 = arith.constant 0 : i32
    return %c0_i32, %c0_i32_0 : i32, i32
  }
  func.func @transform_4(%arg0: i32) -> (i32, i32) {
    %c0_i32 = arith.constant 0 : i32
    %c0_i32_0 = arith.constant 0 : i32
    %c0_i32_1 = arith.constant 0 : i32
    return %c0_i32, %c0_i32_0 : i32, i32
  }
  func.func @transform_5(%arg0: i32) -> (i32, i32, i32) {
    %c0_i32 = arith.constant 0 : i32
    %c0_i32_0 = arith.constant 0 : i32
    %c0_i32_1 = arith.constant 0 : i32
    return %arg0, %c0_i32, %c0_i32_0 : i32, i32, i32
  }
}

</mosaic_0001>

<llo_original>
// kernel: tpu_custom_call.1
$region0: #{tpu_custom_call.1}
  #allocation0 [shape = 'u32[]', space=smem, size = 0x4, offset = 0x4, fixed_abs, tag = 'smem constant byte address 0x4 - core index']
  #allocation1 [shape = 'u32[72,128]{1,0:T(1,128)}', space=vmem, size = 0x9000, scoped, tag = 'internal scratch']
  %s0 = inlined_call_operand.hbm [shape: bf16[2,8,32], index: 0, kind: input, shape index: {}]
  %s1 = inlined_call_operand.hbm [shape: bf16[32,96], index: 1, kind: input, shape index: {}]
  %s2 = inlined_call_operand.vmem [shape: f32[1,96], index: 2, kind: input, shape index: {}]
  %s3 = inlined_call_operand.hbm [shape: bf16[32,32], index: 3, kind: input, shape index: {}]
  %s4 = inlined_call_operand.vmem [shape: f32[1,32], index: 4, kind: input, shape index: {}]
  %s5 = inlined_call_operand.hbm [shape: f32[2,8,32], index: 5, kind: output, shape index: {}]
  %s6 = sld [smem:[#allocation0]]
  $region65: #{tpu_custom_call.1} parent=0
    _
  %s8 = ssub.s32 1, %s6
  %s9 = scalar_select 0, %s8, %s6
  $region1: #{tpu_custom_call.1} parent=0
    #allocation2 [shape = 'u8[4096]{0}', space=vmem, size = 0x1000, scoped, tag = 'input window, operand 0']
    #allocation3 [shape = 's32[2]{0}', space=sflag, size = 0x8, scoped, tag = 'scoped memory for tpu_custom_call.1']
    #allocation4 [shape = 's32[2]{0}', space=sflag, size = 0x8, scoped, tag = 'scoped memory for tpu_custom_call.1']
    #allocation5 [shape = 'u8[8192]{0}', space=vmem, size = 0x2000, scoped, tag = 'input window, operand 1, single buffered']
    #allocation6 [shape = 's32[1]{0}', space=sflag, size = 0x4, scoped, tag = 'scoped memory for tpu_custom_call.1']
    #allocation7 [shape = 'u8[8192]{0}', space=vmem, size = 0x2000, scoped, tag = 'input window, operand 3, single buffered']
    #allocation8 [shape = 'u8[8192]{0}', space=vmem, size = 0x2000, scoped, tag = 'output window, operand 0']
    %10 = vsyncpa [#allocation3], 0
    %s11 = scalar_lea.sflag [#allocation3], 1
    %12 = vsyncpa %s11, 0
    %13 = vsyncpa [#allocation6], 0
    %14 = vsyncpa [#allocation4], 0
    %s15 = scalar_lea.sflag [#allocation4], 1
    %16 = vsyncpa %s15, 0
    loop: start=0, step=1, limit=4
    $region2: #{tpu_custom_call.1} parent=1 // loop_pre_header
      _
    $region3: #{tpu_custom_call.1} parent=1 // loop_header
      %s18 = sphi 0, %s22
      %p19 = scmp.ge.s32.totalorder %s18, 4
      %s28 = sphi 0, %s30
      %s31 = sphi 0, %s28
      %s32 = sphi 0, %s31
      %s48 = sphi 0, %s32
      %s52 = sphi 0, %s52
      %s54 = sphi 0, %s52
      %s55 = sphi 0, %s54
      %s69 = sphi 0, %s55
      %s73 = sphi 0, %s73
      %s75 = sphi 0, %s73
      %s76 = sphi 0, %s75
      %s90 = sphi 0, %s76
      %s94 = sphi 0, %s94
      %s96 = sphi 0, %s94
      %s97 = sphi 0, %s96
      %s111 = sphi 0, %s97
      %s115 = sphi 0, %s115
      %s117 = sphi 0, %s115
      %s118 = sphi 0, %s117
      %s132 = sphi 0, %s118
      %s138 = sphi 0, %s140
      %s141 = sphi 0, %s138
      %s142 = sphi 0, %s141
      %s158 = sphi 0, %s142
    $region4: #{tpu_custom_call.1} parent=1 // loop_header_branch
      %21 = sbr.rel (%p19) target = $region8
    $region5: #{tpu_custom_call.1} parent=1 // loop_body
      %s23 = ssub.s32 %s18, 1
      %s24 = ssub.s32 %s18, 2
      %s25 = sadd.s32 %s18, 1
      %s26 = ssub.s32 %s18, %s25
      %p27 = scmp.eq.s32.totalorder %s26, 0
      %s29 = sadd.s32 %s28, 1
      %s30 = scalar_select %p27, %s28, %s29
      %p33 = pneg %p27
      %p34 = scmp.eq.s32.totalorder %s18, 1
      %p35 = por %p33, %p34
      %p36 = scmp.ne.s32.totalorder %s28, %s31
      %p37 = scmp.eq.s32.totalorder %s18, 0
      %p38 = por %p36, %p37
      %p39 = scmp.ne.s32.totalorder %s28, %s31
      %p40 = scmp.eq.s32.totalorder %s23, 1
      %p41 = por %p39, %p40
      %p42 = scmp.ne.s32.totalorder %s31, %s32
      %p43 = scmp.eq.s32.totalorder %s23, 0
      %p44 = por %p42, %p43
      %p45 = scmp.ne.s32.totalorder %s31, %s32
      %p46 = scmp.eq.s32.totalorder %s24, 1
      %p47 = por %p45, %p46
      %p49 = scmp.ne.s32.totalorder %s32, %s48
      %p50 = scmp.eq.s32.totalorder %s24, 0
      %p51 = por %p49, %p50
      %s53 = sadd.s32 %s52, 1
      %p56 = scmp.eq.s32.totalorder %s18, 1
      %p57 = scmp.ne.s32.totalorder %s52, %s54
      %p58 = scmp.eq.s32.totalorder %s18, 0
      %p59 = por %p57, %p58
      %p60 = scmp.ne.s32.totalorder %s52, %s54
      %p61 = scmp.eq.s32.totalorder %s23, 1
      %p62 = por %p60, %p61
      %p63 = scmp.ne.s32.totalorder %s54, %s55
      %p64 = scmp.eq.s32.totalorder %s23, 0
      %p65 = por %p63, %p64
      %p66 = scmp.ne.s32.totalorder %s54, %s55
      %p67 = scmp.eq.s32.totalorder %s24, 1
      %p68 = por %p66, %p67
      %p70 = scmp.ne.s32.totalorder %s55, %s69
      %p71 = scmp.eq.s32.totalorder %s24, 0
      %p72 = por %p70, %p71
      %s74 = sadd.s32 %s73, 1
      %p77 = scmp.eq.s32.totalorder %s18, 1
      %p78 = scmp.ne.s32.totalorder %s73, %s75
      %p79 = scmp.eq.s32.totalorder %s18, 0
      %p80 = por %p78, %p79
      %p81 = scmp.ne.s32.totalorder %s73, %s75
      %p82 = scmp.eq.s32.totalorder %s23, 1
      %p83 = por %p81, %p82
      %p84 = scmp.ne.s32.totalorder %s75, %s76
      %p85 = scmp.eq.s32.totalorder %s23, 0
      %p86 = por %p84, %p85
      %p87 = scmp.ne.s32.totalorder %s75, %s76
      %p88 = scmp.eq.s32.totalorder %s24, 1
      %p89 = por %p87, %p88
      %p91 = scmp.ne.s32.totalorder %s76, %s90
      %p92 = scmp.eq.s32.totalorder %s24, 0
      %p93 = por %p91, %p92
      %s95 = sadd.s32 %s94, 1
      %p98 = scmp.eq.s32.totalorder %s18, 1
      %p99 = scmp.ne.s32.totalorder %s94, %s96
      %p100 = scmp.eq.s32.totalorder %s18, 0
      %p101 = por %p99, %p100
      %p102 = scmp.ne.s32.totalorder %s94, %s96
      %p103 = scmp.eq.s32.totalorder %s23, 1
      %p104 = por %p102, %p103
      %p105 = scmp.ne.s32.totalorder %s96, %s97
      %p106 = scmp.eq.s32.totalorder %s23, 0
      %p107 = por %p105, %p106
      %p108 = scmp.ne.s32.totalorder %s96, %s97
      %p109 = scmp.eq.s32.totalorder %s24, 1
      %p110 = por %p108, %p109
      %p112 = scmp.ne.s32.totalorder %s97, %s111
      %p113 = scmp.eq.s32.totalorder %s24, 0
      %p114 = por %p112, %p113
      %s116 = sadd.s32 %s115, 1
      %p119 = scmp.eq.s32.totalorder %s18, 1
      %p120 = scmp.ne.s32.totalorder %s115, %s117
      %p121 = scmp.eq.s32.totalorder %s18, 0
      %p122 = por %p120, %p121
      %p123 = scmp.ne.s32.totalorder %s115, %s117
      %p124 = scmp.eq.s32.totalorder %s23, 1
      %p125 = por %p123, %p124
      %p126 = scmp.ne.s32.totalorder %s117, %s118
      %p127 = scmp.eq.s32.totalorder %s23, 0
      %p128 = por %p126, %p127
      %p129 = scmp.ne.s32.totalorder %s117, %s118
      %p130 = scmp.eq.s32.totalorder %s24, 1
      %p131 = por %p129, %p130
      %p133 = scmp.ne.s32.totalorder %s118, %s132
      %p134 = scmp.eq.s32.totalorder %s24, 0
      %p135 = por %p133, %p134
      %s136 = ssub.s32 %s18, %s25
      %p137 = scmp.eq.s32.totalorder %s136, 0
      %s139 = sadd.s32 %s138, 1
      %s140 = scalar_select %p137, %s138, %s139
      %p143 = pneg %p137
      %p144 = scmp.eq.s32.totalorder %s18, 1
      %p145 = por %p143, %p144
      %p146 = scmp.ne.s32.totalorder %s138, %s141
      %p147 = scmp.eq.s32.totalorder %s18, 0
      %p148 = por %p146, %p147
      %p149 = scmp.ne.s32.totalorder %s138, %s141
      %p150 = scmp.eq.s32.totalorder %s23, 1
      %p151 = por %p149, %p150
      %p152 = scmp.ne.s32.totalorder %s141, %s142
      %p153 = scmp.eq.s32.totalorder %s23, 0
      %p154 = por %p152, %p153
      %p155 = scmp.ne.s32.totalorder %s141, %s142
      %p156 = scmp.eq.s32.totalorder %s24, 1
      %p157 = por %p155, %p156
      %p159 = scmp.ne.s32.totalorder %s142, %s158
      %p160 = scmp.eq.s32.totalorder %s24, 0
      %p161 = por %p159, %p160
      %p162 = scmp.le.s32.totalorder 1, %s18
      %p163 = scmp.lt.s32.totalorder %s18, 3
      %p164 = pnand %p162, %p163
      %p165 = pneg %p164
      // Predicated region
      $region9: #{tpu_custom_call.1} parent=5 // pred_check
        _
      $region10: #{tpu_custom_call.1} parent=5 // pred_check_branch
        %167 = sbr.rel (%p164) target = $region12
      $region11: #{tpu_custom_call.1} parent=5 // pred_region
        %s168 = ssub.s32 %s18, 1
        // Predicated region
        $region13: #{tpu_custom_call.1} parent=11 // pred_check
          %p169 = pneg %p65
        $region14: #{tpu_custom_call.1} parent=11 // pred_check_branch
          %171 = sbr.rel (%p169) target = $region16
        $region15: #{tpu_custom_call.1} parent=11 // pred_region
          %173 = vsyncadd [#allocation6], 0
          %s174 = sshll.u32 %s1, 4
          %s175 = int_to_ptr.hbm [resolvable:$true] %s174
          %s176 = sshll.u32 [#allocation5], 4
          %s177 = int_to_ptr.vmem [resolvable:$true] %s176
          %182 = dma.hbm_to_vmem [thread:$0]  %s175, 256, %s177, [#allocation6], 64, 64, 4
        $region16: #{tpu_custom_call.1} parent=11 // pred_fallthru
          _
        // Predicated region
        $region17: #{tpu_custom_call.1} parent=11 // pred_check
          %p183 = pneg %p86
        $region18: #{tpu_custom_call.1} parent=11 // pred_check_branch
          %185 = sbr.rel (%p183) target = $region20
        $region19: #{tpu_custom_call.1} parent=11 // pred_region
          _
        $region20: #{tpu_custom_call.1} parent=11 // pred_fallthru
          _
        // Predicated region
        $region21: #{tpu_custom_call.1} parent=11 // pred_check
          %p186 = pneg %p107
        $region22: #{tpu_custom_call.1} parent=11 // pred_check_branch
          %188 = sbr.rel (%p186) target = $region24
        $region23: #{tpu_custom_call.1} parent=11 // pred_region
          %190 = vsyncadd [#allocation6], 0
          %s191 = sshll.u32 %s3, 4
          %s192 = int_to_ptr.hbm [resolvable:$true] %s191
          %s193 = sshll.u32 [#allocation7], 4
          %s194 = int_to_ptr.vmem [resolvable:$true] %s193
          %199 = dma.hbm_to_vmem [thread:$0]  %s192, 256, %s194, [#allocation6], 64, 64, 4
        $region24: #{tpu_custom_call.1} parent=11 // pred_fallthru
          _
        // Predicated region
        $region25: #{tpu_custom_call.1} parent=11 // pred_check
          %p200 = pneg %p128
        $region26: #{tpu_custom_call.1} parent=11 // pred_check_branch
          %202 = sbr.rel (%p200) target = $region28
        $region27: #{tpu_custom_call.1} parent=11 // pred_region
          _
        $region28: #{tpu_custom_call.1} parent=11 // pred_fallthru
          _
      $region12: #{tpu_custom_call.1} parent=5 // pred_fallthru
        _
      %p203 = scmp.lt.s32.totalorder %s18, 2
      // Predicated region
      $region29: #{tpu_custom_call.1} parent=5 // pred_check
        %p204 = pneg %p203
      $region30: #{tpu_custom_call.1} parent=5 // pred_check_branch
        %206 = sbr.rel (%p204) target = $region32
      $region31: #{tpu_custom_call.1} parent=5 // pred_region
        // Predicated region
        $region33: #{tpu_custom_call.1} parent=31 // pred_check
          %p207 = pneg %p38
        $region34: #{tpu_custom_call.1} parent=31 // pred_check_branch
          %209 = sbr.rel (%p207) target = $region36
        $region35: #{tpu_custom_call.1} parent=31 // pred_region
          %s210 = sand.u32 %s28, 1
          %s211 = scalar_lea.sflag [#allocation3], %s210
          %s212 = sand.u32 %s28, 1
          %s213 = smul.addr %s212, 4
          %s214 = scalar_lea.vmem [#allocation2], %s213
          %216 = vsyncadd %s211, 0
          %s217 = smul.addr %s18, 4
          %s218 = scalar_lea.hbm %s0, %s217
          %s220 = sshll.u32 %s218, 4
          %s221 = int_to_ptr.hbm [resolvable:$true] %s220
          %s222 = sshll.u32 %s214, 4
          %s223 = int_to_ptr.vmem [resolvable:$true] %s222
          %225 = dma.hbm_to_vmem [thread:$0]  %s221, 64, %s223, %s211
        $region36: #{tpu_custom_call.1} parent=31 // pred_fallthru
          _
      $region32: #{tpu_custom_call.1} parent=5 // pred_fallthru
        _
      %p226 = scmp.le.s32.totalorder 1, %s18
      %p227 = scmp.lt.s32.totalorder %s18, 3
      %p228 = pnand %p226, %p227
      %p229 = pneg %p228
      // Predicated region
      $region37: #{tpu_custom_call.1} parent=5 // pred_check
        _
      $region38: #{tpu_custom_call.1} parent=5 // pred_check_branch
        %231 = sbr.rel (%p228) target = $region40
      $region39: #{tpu_custom_call.1} parent=5 // pred_region
        %s232 = ssub.s32 %s18, 1
        %s233 = sand.u32 %s31, 1
        %s234 = scalar_lea.sflag [#allocation3], %s233
        %s235 = sand.u32 %s31, 1
        %s236 = smul.addr %s235, 4
        %s237 = scalar_lea.vmem [#allocation2], %s236
        // Predicated region
        $region41: #{tpu_custom_call.1} parent=39 // pred_check
          %p238 = pneg %p44
        $region42: #{tpu_custom_call.1} parent=39 // pred_check_branch
          %240 = sbr.rel (%p238) target = $region44
        $region43: #{tpu_custom_call.1} parent=39 // pred_region
          %242 = dma.done %s234, 64
        $region44: #{tpu_custom_call.1} parent=39 // pred_fallthru
          _
        // Predicated region
        $region45: #{tpu_custom_call.1} parent=39 // pred_check
          %p243 = pneg %p65
        $region46: #{tpu_custom_call.1} parent=39 // pred_check_branch
          %245 = sbr.rel (%p243) target = $region48
        $region47: #{tpu_custom_call.1} parent=39 // pred_region
          %247 = dma.done [#allocation6], 256
        $region48: #{tpu_custom_call.1} parent=39 // pred_fallthru
          _
        // Predicated region
        $region49: #{tpu_custom_call.1} parent=39 // pred_check
          %p248 = pneg %p107
        $region50: #{tpu_custom_call.1} parent=39 // pred_check_branch
          %250 = sbr.rel (%p248) target = $region52
        $region51: #{tpu_custom_call.1} parent=39 // pred_region
          %252 = dma.done [#allocation6], 256
        $region52: #{tpu_custom_call.1} parent=39 // pred_fallthru
          _
        %s253 = sand.u32 %s31, 1
        %s254 = scalar_lea.sflag [#allocation3], %s253
        %s255 = sand.u32 %s31, 1
        %s256 = smul.addr %s255, 4
        %s257 = scalar_lea.vmem [#allocation2], %s256
        %p258 = pneg %p44
        %p259 = pneg %p41
        %p260 = pneg %p65
        %p261 = pneg %p62
        %p262 = pneg %p86
        %p263 = pneg %p83
        %p264 = pneg %p107
        %p265 = pneg %p104
        %p266 = pneg %p128
        %p267 = pneg %p125
        %p268 = pneg %p154
        %p269 = pneg %p151
        %s270 = sand.u32 %s141, 1
        %s271 = scalar_lea.sflag [#allocation4], %s270
        %s272 = sand.u32 %s141, 1
        %s273 = smul.addr %s272, 8
        %s274 = scalar_lea.vmem [#allocation8], %s273
        %v276 = vld [vmem:[%s237] sm:$0xf]
        %v277 = vld [vmem:[#allocation5] sm:$0xf]
        %v278 = vld [vmem:[#allocation5 + $0x4] sm:$0xf]
        %v279 = vld [vmem:[#allocation5 + $0x8] sm:$0xf]
        %v280 = vld [vmem:[#allocation5 + $0xc] sm:$0xf]
        %v281 = vld [vmem:[%s2] sm:$0x1]
        %v283 = vperm.slane %v281, 0
        %v289 = vunpack.c.l.b16 %v277
        %v290 = vunpack.c.l.b16 %v278
        %v291 = vunpack.c.l.b16 %v279
        %v292 = vunpack.c.l.b16 %v280
        %v293 = vpack.c.b16 %v290, %v289
        %v294 = vpack.c.b16 %v292, %v291
        %vm297 = vcmask 261120
        %v299 = vsel %vm297, %v276, 0
        %301 = vmatpush.bf16.msra.mxu0 0
        %302 = vmatpush.bf16.msra.mxu0 0
        %303 = vmatpush.bf16.msra.mxu0 0
        %304 = vmatpush.bf16.msra.mxu0 0
        %305 = vmatpush.bf16.msra.mxu0 0
        %306 = vmatpush.bf16.msra.mxu0 0
        %307 = vmatpush.bf16.msra.mxu0 %v294
        %308 = vmatpush.bf16.msra.mxu0 %v293
        %309 = vmatmul.bf16.gmra.mxu0 %v299
        %v310 = vpop.f32.mrf.mxu0
        %v311 = vadd.f32 %v283, %v310
        %v312 = vpop.f32.mrf.mxu0
        %313 = vdwg.mxu0
        %315 = vrot.lane.b32.xlu0 %v311, 120
        %v316 = vpop.permute.xlu0 %315
        %318 = vrot.lane.b32.xlu0 %v311, 112
        %v319 = vpop.permute.xlu0 %318
        %321 = vrot.lane.b32.xlu0 %v311, 104
        %v322 = vpop.permute.xlu0 %321
        %v324 = vpack.c.bf16 %v311, %v311
        %v325 = vpack.c.bf16 %v316, %v316
        %v326 = vpack.c.bf16 %v319, %v319
        %v327 = vpack.c.bf16 %v322, %v322
        %v329 = vunpack.c.l.b16 %v324
        %v330 = vpack.c.b16 %v329, %v329
        %331 = vrot.lane.b32.xlu0 %v330, 96
        %v332 = vpop.permute.xlu0 %331
        %vm333 = vcmask 64512
        %v335 = vsel %vm333, %v324, 0
        %v338 = vsel %vm333, %v332, 0
        %340 = vmatpush.bf16.xpose.msra.mxu0 0
        %341 = vmatpush.bf16.xpose.msra.mxu0 0
        %342 = vmatpush.bf16.xpose.msra.mxu0 0
        %343 = vmatpush.bf16.xpose.msra.mxu0 0
        %344 = vmatpush.bf16.xpose.msra.mxu0 0
        %345 = vmatpush.bf16.xpose.msra.mxu0 0
        %346 = vmatpush.bf16.xpose.msra.mxu0 0
        %347 = vmatpush.bf16.xpose.msra.mxu0 %v338
        %348 = vmatmul.bf16.gmra.mxu0 %v335
        %v349 = vpop.f32.mrf.mxu0
        %v350 = vadd.f32 0.0, %v349
        %v351 = vpop.f32.mrf.mxu0
        %352 = vdwg.mxu0
        %v354 = vunpack.c.l.b16 %v325
        %v355 = vpack.c.b16 %v354, %v354
        %356 = vrot.lane.b32.xlu0 %v355, 96
        %v357 = vpop.permute.xlu0 %356
        %v359 = vsel %vm333, %v325, 0
        %v362 = vsel %vm333, %v357, 0
        %364 = vmatpush.bf16.xpose.msra.mxu0 0
        %365 = vmatpush.bf16.xpose.msra.mxu0 0
        %366 = vmatpush.bf16.xpose.msra.mxu0 0
        %367 = vmatpush.bf16.xpose.msra.mxu0 0
        %368 = vmatpush.bf16.xpose.msra.mxu0 0
        %369 = vmatpush.bf16.xpose.msra.mxu0 0
        %370 = vmatpush.bf16.xpose.msra.mxu0 0
        %371 = vmatpush.bf16.xpose.msra.mxu0 %v362
        %372 = vmatmul.bf16.gmra.mxu0 %v359
        %v373 = vpop.f32.mrf.mxu0
        %v374 = vadd.f32 0.0, %v373
        %v375 = vpop.f32.mrf.mxu0
        %376 = vdwg.mxu0
        %v378 = vunpack.c.l.b16 %v326
        %v379 = vpack.c.b16 %v378, %v378
        %380 = vrot.lane.b32.xlu0 %v379, 96
        %v381 = vpop.permute.xlu0 %380
        %v383 = vsel %vm333, %v326, 0
        %v386 = vsel %vm333, %v381, 0
        %388 = vmatpush.bf16.xpose.msra.mxu0 0
        %389 = vmatpush.bf16.xpose.msra.mxu0 0
        %390 = vmatpush.bf16.xpose.msra.mxu0 0
        %391 = vmatpush.bf16.xpose.msra.mxu0 0
        %392 = vmatpush.bf16.xpose.msra.mxu0 0
        %393 = vmatpush.bf16.xpose.msra.mxu0 0
        %394 = vmatpush.bf16.xpose.msra.mxu0 0
        %395 = vmatpush.bf16.xpose.msra.mxu0 %v386
        %396 = vmatmul.bf16.gmra.mxu0 %v383
        %v397 = vpop.f32.mrf.mxu0
        %v398 = vadd.f32 0.0, %v397
        %v399 = vpop.f32.mrf.mxu0
        %400 = vdwg.mxu0
        %v402 = vunpack.c.l.b16 %v327
        %v403 = vpack.c.b16 %v402, %v402
        %404 = vrot.lane.b32.xlu0 %v403, 96
        %v405 = vpop.permute.xlu0 %404
        %v407 = vsel %vm333, %v327, 0
        %v410 = vsel %vm333, %v405, 0
        %412 = vmatpush.bf16.xpose.msra.mxu0 0
        %413 = vmatpush.bf16.xpose.msra.mxu0 0
        %414 = vmatpush.bf16.xpose.msra.mxu0 0
        %415 = vmatpush.bf16.xpose.msra.mxu0 0
        %416 = vmatpush.bf16.xpose.msra.mxu0 0
        %417 = vmatpush.bf16.xpose.msra.mxu0 0
        %418 = vmatpush.bf16.xpose.msra.mxu0 0
        %419 = vmatpush.bf16.xpose.msra.mxu0 %v410
        %420 = vmatmul.bf16.gmra.mxu0 %v407
        %v421 = vpop.f32.mrf.mxu0
        %v422 = vadd.f32 0.0, %v421
        %v423 = vpop.f32.mrf.mxu0
        %424 = vdwg.mxu0
        %v425 = vsel %vm333, %v350, -inf
        %426 = vmax.xlane.f32.xlu0 %v425
        %v427 = vpop.xlane.xlu0 %426
        %v428 = vsel %vm333, %v374, -inf
        %429 = vmax.xlane.f32.xlu0 %v428
        %v430 = vpop.xlane.xlu0 %429
        %v431 = vsel %vm333, %v398, -inf
        %432 = vmax.xlane.f32.xlu0 %v431
        %v433 = vpop.xlane.xlu0 %432
        %v434 = vsel %vm333, %v422, -inf
        %435 = vmax.xlane.f32.xlu0 %v434
        %v436 = vpop.xlane.xlu0 %435
        %v437 = vsub.f32 %v350, %v427
        %v438 = vsub.f32 %v374, %v430
        %v439 = vsub.f32 %v398, %v433
        %v440 = vsub.f32 %v422, %v436
        %v441 = vmul.f32 %v437, 1.442695
        %v442 = vpow.pop %v441
        %v443 = vmul.f32 %v438, 1.442695
        %v444 = vpow.pop %v443
        %v445 = vmul.f32 %v439, 1.442695
        %v446 = vpow.pop %v445
        %v447 = vmul.f32 %v440, 1.442695
        %v448 = vpow.pop %v447
        %v449 = vsel %vm333, %v442, 0.0
        %450 = vadd.xlane.f32.xlu0 %v449
        %v451 = vpop.xlane.xlu0 %450
        %v452 = vsel %vm333, %v444, 0.0
        %453 = vadd.xlane.f32.xlu0 %v452
        %v454 = vpop.xlane.xlu0 %453
        %v455 = vsel %vm333, %v446, 0.0
        %456 = vadd.xlane.f32.xlu0 %v455
        %v457 = vpop.xlane.xlu0 %456
        %v458 = vsel %vm333, %v448, 0.0
        %459 = vadd.xlane.f32.xlu0 %v458
        %v460 = vpop.xlane.xlu0 %459
        %v461 = vrcp.pop %v451
        %v462 = vrcp.pop %v454
        %v463 = vrcp.pop %v457
        %v464 = vrcp.pop %v460
        %v465 = vmul.f32 %v442, %v461
        %v466 = vmul.f32 %v444, %v462
        %v467 = vmul.f32 %v446, %v463
        %v468 = vmul.f32 %v448, %v464
        %v469 = vpack.c.bf16 %v465, %v465
        %v470 = vpack.c.bf16 %v466, %v466
        %v471 = vpack.c.bf16 %v467, %v467
        %v472 = vpack.c.bf16 %v468, %v468
        %473 = vrot.lane.b32.xlu0 %v330, 64
        %v474 = vpop.permute.xlu0 %473
        %v476 = vsel %vm333, %v469, 0
        %vm478 = vcmask 1043456
        %v480 = vsel %vm478, %v474, 0
        %482 = vmatpush.bf16.msra.mxu0 0
        %483 = vmatpush.bf16.msra.mxu0 0
        %484 = vmatpush.bf16.msra.mxu0 0
        %485 = vmatpush.bf16.msra.mxu0 0
        %486 = vmatpush.bf16.msra.mxu0 0
        %487 = vmatpush.bf16.msra.mxu0 0
        %488 = vmatpush.bf16.msra.mxu0 0
        %489 = vmatpush.bf16.msra.mxu0 %v480
        %490 = vmatmul.bf16.gmra.mxu0 %v476
        %v491 = vpop.f32.mrf.mxu0
        %v492 = vadd.f32 0.0, %v491
        %v493 = vpop.f32.mrf.mxu0
        %494 = vdwg.mxu0
        %495 = vrot.lane.b32.xlu0 %v355, 64
        %v496 = vpop.permute.xlu0 %495
        %v498 = vsel %vm333, %v470, 0
        %v501 = vsel %vm478, %v496, 0
        %503 = vmatpush.bf16.msra.mxu0 0
        %504 = vmatpush.bf16.msra.mxu0 0
        %505 = vmatpush.bf16.msra.mxu0 0
        %506 = vmatpush.bf16.msra.mxu0 0
        %507 = vmatpush.bf16.msra.mxu0 0
        %508 = vmatpush.bf16.msra.mxu0 0
        %509 = vmatpush.bf16.msra.mxu0 0
        %510 = vmatpush.bf16.msra.mxu0 %v501
        %511 = vmatmul.bf16.gmra.mxu0 %v498
        %v512 = vpop.f32.mrf.mxu0
        %v513 = vadd.f32 0.0, %v512
        %v514 = vpop.f32.mrf.mxu0
        %515 = vdwg.mxu0
        %516 = vrot.lane.b32.xlu0 %v379, 64
        %v517 = vpop.permute.xlu0 %516
        %v519 = vsel %vm333, %v471, 0
        %v522 = vsel %vm478, %v517, 0
        %524 = vmatpush.bf16.msra.mxu0 0
        %525 = vmatpush.bf16.msra.mxu0 0
        %526 = vmatpush.bf16.msra.mxu0 0
        %527 = vmatpush.bf16.msra.mxu0 0
        %528 = vmatpush.bf16.msra.mxu0 0
        %529 = vmatpush.bf16.msra.mxu0 0
        %530 = vmatpush.bf16.msra.mxu0 0
        %531 = vmatpush.bf16.msra.mxu0 %v522
        %532 = vmatmul.bf16.gmra.mxu0 %v519
        %v533 = vpop.f32.mrf.mxu0
        %v534 = vadd.f32 0.0, %v533
        %v535 = vpop.f32.mrf.mxu0
        %536 = vdwg.mxu0
        %537 = vrot.lane.b32.xlu0 %v403, 64
        %v538 = vpop.permute.xlu0 %537
        %v540 = vsel %vm333, %v472, 0
        %v543 = vsel %vm478, %v538, 0
        %545 = vmatpush.bf16.msra.mxu0 0
        %546 = vmatpush.bf16.msra.mxu0 0
        %547 = vmatpush.bf16.msra.mxu0 0
        %548 = vmatpush.bf16.msra.mxu0 0
        %549 = vmatpush.bf16.msra.mxu0 0
        %550 = vmatpush.bf16.msra.mxu0 0
        %551 = vmatpush.bf16.msra.mxu0 0
        %552 = vmatpush.bf16.msra.mxu0 %v543
        %553 = vmatmul.bf16.gmra.mxu0 %v540
        %v554 = vpop.f32.mrf.mxu0
        %v555 = vadd.f32 0.0, %v554
        %v556 = vpop.f32.mrf.mxu0
        %557 = vdwg.mxu0
        %v558 = vpack.c.bf16 %v492, %v492
        %v559 = vpack.c.bf16 %v513, %v513
        %v560 = vpack.c.bf16 %v534, %v534
        %v561 = vpack.c.bf16 %v555, %v555
        %v563 = vunpack.c.l.b16 %v559
        %v564 = vpack.c.b16 %v563, %v563
        %565 = vrot.lane.b32.xlu0 %v564, 8
        %v566 = vpop.permute.xlu0 %565
        %v568 = vunpack.c.l.b16 %v560
        %v569 = vpack.c.b16 %v568, %v568
        %570 = vrot.lane.b32.xlu0 %v569, 16
        %v571 = vpop.permute.xlu0 %570
        %v573 = vunpack.c.l.b16 %v561
        %v574 = vpack.c.b16 %v573, %v573
        %575 = vrot.lane.b32.xlu0 %v574, 24
        %v576 = vpop.permute.xlu0 %575
        %v579 = vsel %vm333, %v558, %v566
        %vm580 = vcmask 130048
        %v582 = vsel %vm580, %v579, %v571
        %vm583 = vcmask 195584
        %v585 = vsel %vm583, %v582, %v576
        %v586 = vld [vmem:[#allocation7] sm:$0xf]
        %v587 = vld [vmem:[#allocation7 + $0x4] sm:$0xf]
        %v588 = vld [vmem:[#allocation7 + $0x8] sm:$0xf]
        %v589 = vld [vmem:[#allocation7 + $0xc] sm:$0xf]
        %v590 = vld [vmem:[%s4] sm:$0x1]
        %v592 = vperm.slane %v590, 0
        %v598 = vunpack.c.l.b16 %v586
        %v599 = vunpack.c.l.b16 %v587
        %v600 = vunpack.c.l.b16 %v588
        %v601 = vunpack.c.l.b16 %v589
        %v602 = vpack.c.b16 %v599, %v598
        %v603 = vpack.c.b16 %v601, %v600
        %v606 = vsel %vm297, %v585, 0
        %608 = vmatpush.bf16.msra.mxu0 0
        %609 = vmatpush.bf16.msra.mxu0 0
        %610 = vmatpush.bf16.msra.mxu0 0
        %611 = vmatpush.bf16.msra.mxu0 0
        %612 = vmatpush.bf16.msra.mxu0 0
        %613 = vmatpush.bf16.msra.mxu0 0
        %614 = vmatpush.bf16.msra.mxu0 %v603
        %615 = vmatpush.bf16.msra.mxu0 %v602
        %616 = vmatmul.bf16.gmra.mxu0 %v606
        %v617 = vpop.f32.mrf.mxu0
        %v618 = vadd.f32 %v592, %v617
        %v619 = vpop.f32.mrf.mxu0
        %620 = vdwg.mxu0
        %621 = vst.msk [vmem:[%s274] sm:$0xff] %vm297, %v618
        %s622 = sand.u32 %s141, 1
        %s623 = scalar_lea.sflag [#allocation4], %s622
        %s624 = sand.u32 %s141, 1
        %s625 = smul.addr %s624, 8
        %s626 = scalar_lea.vmem [#allocation8], %s625
        // Predicated region
        $region53: #{tpu_custom_call.1} parent=39 // pred_check
          %p627 = pneg %p151
        $region54: #{tpu_custom_call.1} parent=39 // pred_check_branch
          %629 = sbr.rel (%p627) target = $region56
        $region55: #{tpu_custom_call.1} parent=39 // pred_region
          %631 = vsyncadd %s623, 0
          %s632 = smul.addr %s23, 8
          %s633 = scalar_lea.hbm %s5, %s632
          %s635 = sshll.u32 %s626, 4
          %s636 = int_to_ptr.vmem [resolvable:$true] %s635
          %s637 = sshll.u32 %s633, 4
          %s638 = int_to_ptr.hbm [resolvable:$true] %s637
          %640 = dma.vmem_to_hbm [thread:$0]  %s636, 128, %s638, %s623
        $region56: #{tpu_custom_call.1} parent=39 // pred_fallthru
          _
      $region40: #{tpu_custom_call.1} parent=5 // pred_fallthru
        _
      %p641 = scmp.le.s32.totalorder 2, %s18
      // Predicated region
      $region57: #{tpu_custom_call.1} parent=5 // pred_check
        %p642 = pneg %p641
      $region58: #{tpu_custom_call.1} parent=5 // pred_check_branch
        %644 = sbr.rel (%p642) target = $region60
      $region59: #{tpu_custom_call.1} parent=5 // pred_region
        %s645 = ssub.s32 %s18, 2
        // Predicated region
        $region61: #{tpu_custom_call.1} parent=59 // pred_check
          %p646 = pneg %p157
        $region62: #{tpu_custom_call.1} parent=59 // pred_check_branch
          %648 = sbr.rel (%p646) target = $region64
        $region63: #{tpu_custom_call.1} parent=59 // pred_region
          %s649 = sand.u32 %s142, 1
          %s650 = scalar_lea.sflag [#allocation4], %s649
          %s651 = sand.u32 %s142, 1
          %s652 = smul.addr %s651, 8
          %s653 = scalar_lea.vmem [#allocation8], %s652
          %655 = dma.done %s650, 128
        $region64: #{tpu_custom_call.1} parent=59 // pred_fallthru
          _
      $region60: #{tpu_custom_call.1} parent=5 // pred_fallthru
        _
    $region6: #{tpu_custom_call.1} parent=1 // loop_footer
      %s22 = sadd.s32 1, %s18
    $region7: #{tpu_custom_call.1} parent=1 // loop_footer_branch
      %17 = sbr.rel target = $region3
    $region8: #{tpu_custom_call.1} parent=1 // loop_exit
      _
    %656 = vsyncpa [#allocation3], 1
    %s657 = scalar_lea.sflag [#allocation3], 1
    %658 = vsyncpa %s657, 1
    %659 = vsyncpa [#allocation6], 1
    %660 = vsyncpa [#allocation4], 1
    %s661 = scalar_lea.sflag [#allocation4], 1
    %662 = vsyncpa %s661, 1

</llo_original>
